<compile_context>
chip_gen: v7x
topology: tpu7x:2x2x1
jax: 0.10.0
libtpu: 0.0.40
codegen_flags: <defaults>
</compile_context>

<pallas_src>
import jax
import jax.numpy as jnp
from jax import lax
from jax.experimental import pallas as pl
from jax.experimental.pallas import tpu as pltpu

_AUX_LANES = 128  # lane-dense auxiliary output row width (one full vreg width)


# ----------------------------- Pallas kernel -------------------------------

def _make_fused_kernel(M, OUT, N, cut_value):
    """Build the fused forward kernel (all sizes / the cut scalar are static)."""
    inv_u = 1.0 / float(N * OUT)
    inv_x = 1.0 / float(M)

    def kernel(params_ref, xT_ref, ueT_ref, uT_ref, aux_ref):
        # packed params: columns [w | b | s | cut_now | cT_0 .. cT_{OUT-1}]
        # static slices on the ref are free.
        w = params_ref[:, 0:1]          # (M, 1)
        b = params_ref[:, 1:2]          # (M, 1)
        s = params_ref[:, 2:3]          # (M, 1)  s = 1 / (sqrt(2) * nu_i)
        cut_now = params_ref[:, 3:4]    # (M, 1)

        # ---------------- u_loss path (lane-dense, N on lanes) -------------
        x = xT_ref[...]                 # (1, N)
        # z_i = linears[i](x) = x * w_i + b_i  (identity-initialized Linear(1,1))
        z = w * x + b                   # (M, N)  lane-broadcast FMA (VPU)
        # a[i, :] = P[i](z_i)
        # TODO(synk): in the original TGPT-PINN, P[i] is a pre-trained
        # full-order PINN network; here it is modelled analytically as the
        # kink profile tanh(z / (sqrt(2) * nu_i)).
        a = jnp.tanh(z * s)             # (M, N)  EUP-bound at scale

        # output = a @ initial_c.T, done as VPU mul + XLU sublane reduce.
        # (MXU only pays off once M*OUT ~ 128*128; at M=8, OUT=1 it is pure
        #  fill/drain overhead — keep the vector path.)
        err = jnp.zeros((1, 1), jnp.float32)
        for o in range(OUT):            # OUT is tiny and static
            co = params_ref[:, 4 + o:5 + o]                    # (M, 1)
            row = jnp.sum(a * co, axis=0, keepdims=True)       # (1, N)
            uT_ref[o:o + 1, :] = row                           # direct store
            d = row - ueT_ref[o:o + 1, :]                      # (1, N)
            err = err + jnp.sum(d * d, axis=1, keepdims=True)  # (1, 1)
        lu = err * inv_u                                       # loss_u

        # ---------------- x_loss path (M FMAs, folded in) -------------------
        xcut = w * cut_value + b                               # (M, 1)
        dx = xcut - cut_now
        lx = jnp.sum(dx * dx, axis=0, keepdims=True) * inv_x   # (1, 1)

        # ---------------- single lane-dense auxiliary output ----------------
        # Full (M, 128) tile built in vregs (unmasked vst, one writeback DMA):
        #   lane 0      -> x_cut column
        #   lane 1      -> loss_u (replicated)
        #   lane 2      -> loss_x (replicated)
        lane = lax.broadcasted_iota(jnp.int32, (M, _AUX_LANES), 1)
        aux = jnp.where(lane == 0, xcut, jnp.float32(0.0))
        aux = jnp.where(lane == 1, lu, aux)
        aux = jnp.where(lane == 2, lx, aux)
        aux_ref[...] = aux

    return kernel


def _make_fused_call(M, OUT, N, cut_value):
    """Return a pure function (params, xT, ueT) -> (uT, aux) around pallas_call."""
    kernel = _make_fused_kernel(M, OUT, N, cut_value)
    idx = lambda i: (0, 0)

    def call(params, xT, ueT):
        return pl.pallas_call(
            kernel,
            out_shape=(
                jax.ShapeDtypeStruct((OUT, N), jnp.float32),        # u (transposed)
                jax.ShapeDtypeStruct((M, _AUX_LANES), jnp.float32), # x_cut + losses
            ),
            grid_spec=pltpu.PrefetchScalarGridSpec(
                num_scalar_prefetch=0,
                grid=(1,),                              # whole problem = a few vregs
                in_specs=[
                    pl.BlockSpec((M, 4 + OUT), idx),    # packed params (1 DMA)
                    pl.BlockSpec((1, N), idx),          # x (lane-dense)
                    pl.BlockSpec((OUT, N), idx),        # u_exact (transposed)
                ],
                out_specs=[
                    pl.BlockSpec((OUT, N), idx),
                    pl.BlockSpec((M, _AUX_LANES), idx),
                ],
            ),
            compiler_params=pltpu.CompilerParams(
                dimension_semantics=("arbitrary",)),
        )(params, xT, ueT)

    return call


# ------------------------------ JAX wrapper --------------------------------

class GPTPallas:
    def __init__(self, layers, nu, nu_neurons, initial_c, x_data, u_exact, P=None):
        assert layers[0] == 1, "kink TGPT-PINN uses 1-D input (layers[0] == 1)"
        # TODO(synk): `P` (pre-trained per-neuron PINN activations) has no clean
        # Pallas equivalent here; it is modelled analytically inside the kernel.
        self.layers = layers
        self.nu = float(nu)
        M = layers[1]
        self.M = M

        # per-neuron Linear(1,1): weight = eye(1) -> 1.0, bias = 0.0
        # stored as (M, 1) so they broadcast along the lane (N) axis in-kernel.
        self.w = jnp.ones((M, 1), jnp.float32)
        self.b = jnp.zeros((M, 1), jnp.float32)
        # activation scale per neuron (stands in for the pre-trained P[i])
        nu_n = jnp.asarray(nu_neurons, jnp.float32).reshape(M, 1)
        self.s = 1.0 / (jnp.sqrt(jnp.float32(2.0)) * nu_n)          # (M, 1)
        # final bias-free Linear(M, OUT): PyTorch weight is (OUT, M); store transposed
        self.cT = jnp.asarray(initial_c, jnp.float32).T             # (M, OUT)
        self.OUT = self.cT.shape[1]
        self.cut_now = (nu_n + 0.4) / 2.0                           # (M, 1)

        # data, stored lane-dense (N on the last axis)
        x_data = jnp.asarray(x_data, jnp.float32)                   # (N, 1)
        u_exact = jnp.asarray(u_exact, jnp.float32)                 # (N, OUT)
        self.N = x_data.shape[0]
        self.xT = x_data.reshape(1, self.N)                         # (1, N)
        self.ueT = u_exact.T                                        # (OUT, N)

        # single packed parameter tile: [w | b | s | cut_now | cT columns]
        self.params = jnp.concatenate(
            [self.w, self.b, self.s, self.cut_now, self.cT], axis=1)  # (M, 4+OUT)

        cut_value = (self.nu + 0.4) / 2.0   # compile-time scalar, closed over
        # Jitted pure function of the packed params/data: compiled once, cheap
        # dispatch per call, no stale-output caching (params may be retrained).
        self._fused = jax.jit(_make_fused_call(self.M, self.OUT, self.N, cut_value))

    def refresh_params(self):
        """Re-pack after any update to w / b / cT (training loop hook)."""
        self.params = jnp.concatenate(
            [self.w, self.b, self.s, self.cut_now, self.cT], axis=1)

    def _run(self):
        return self._fused(self.params, self.xT, self.ueT)

    # ------------------------------ module API -----------------------------
    def forward(self, datatype, lane_dense=False):
        uT, aux = self._run()
        if datatype == 'u_loss':
            # lane_dense=True avoids the host-side transpose (extra HBM pass at
            # large N) when the consumer can accept the (OUT, N) layout.
            return uT if lane_dense else uT.T          # (N, OUT)
        if datatype == 'x_loss':
            return aux[:, 0:1]                         # (M, 1)
        raise ValueError(datatype)

    def loss_u(self):
        _, aux = self._run()
        return aux[0, 1]

    def loss_x(self):
        _, aux = self._run()
        return aux[0, 2]


# --------------------------------- main -------------------------------------

if __name__ == "__main__":
    key = jax.random.PRNGKey(0)
    k1, k2 = jax.random.split(key)

    N = 256            # number of collocation points (lane axis, multiple of 128)
    M = 8              # layers[1]: number of pre-trained "activation" neurons
    OUT = 1            # layers[2]
    layers = [1, M, OUT]

    nu = 0.1
    nu_neurons = jnp.linspace(0.05, 0.5, M).astype(jnp.float32)     # (M,)
    initial_c = jax.random.normal(k1, (OUT, M), jnp.float32) * 0.1  # PyTorch (out, in)

    x_data = jax.random.uniform(k2, (N, 1), jnp.float32, -1.0, 1.0)
    u_exact = jnp.tanh(x_data / (jnp.sqrt(2.0) * nu)).astype(jnp.float32)

    model = GPTPallas(layers, nu, nu_neurons, initial_c, x_data, u_exact)

    u = model.forward('u_loss')          # (N, OUT)
    x_cut = model.forward('x_loss')      # (M, 1)
    lu = model.loss_u()
    lx = model.loss_x()

    jax.block_until_ready((u, x_cut, lu, lx))

    # reference check in plain JAX
    w_row = model.w.reshape(1, M)
    b_row = model.b.reshape(1, M)
    s_row = model.s.reshape(1, M)
    z_ref = x_data * w_row + b_row                         # (N, M)
    a_ref = jnp.tanh(z_ref * s_row)                        # (N, M)
    u_ref = a_ref @ model.cT                               # (N, OUT)
    xcut_ref = (model.w * ((nu + 0.4) / 2.0) + model.b)    # (M, 1)
    lu_ref = jnp.mean((u_ref - u_exact) ** 2)
    lx_ref = jnp.mean((xcut_ref - model.cut_now) ** 2)

    assert jnp.allclose(u, u_ref, atol=1e-5), "u_loss path mismatch"
    assert jnp.allclose(x_cut, xcut_ref, atol=1e-6), "x_loss path mismatch"
    assert jnp.allclose(lu, lu_ref, atol=1e-5), "loss_u mismatch"
    assert jnp.allclose(lx, lx_ref, atol=1e-6), "loss_x mismatch"

    print("KERNEL_OK")
</pallas_src>

<mosaic_0001>
module attributes {stable_mosaic.version = 11 : i64} {
  func.func @kernel(%arg0: i32, %arg1: memref<8x5xf32, #tpu.memory_space<vmem>>, %arg2: memref<1x256xf32, #tpu.memory_space<vmem>>, %arg3: memref<1x256xf32, #tpu.memory_space<vmem>>, %arg4: memref<1x256xf32, #tpu.memory_space<vmem>>, %arg5: memref<8x128xf32, #tpu.memory_space<vmem>>) attributes {dimension_semantics = [#tpu.dimension_semantics<arbitrary>], iteration_bounds = array<i64: 1>, scalar_prefetch = 0 : i64, scratch_operands = 0 : i64, tpu.core_type = #tpu.core_type<tc>, window_params = [{pipeline_mode = #tpu.pipeline_mode<synchronous>, transform_indices = @transform_0, window_bounds = array<i64: 8, 5>}, {pipeline_mode = #tpu.pipeline_mode<synchronous>, transform_indices = @transform_1, window_bounds = array<i64: 1, 256>}, {pipeline_mode = #tpu.pipeline_mode<synchronous>, transform_indices = @transform_2, window_bounds = array<i64: 1, 256>}, {pipeline_mode = #tpu.pipeline_mode<synchronous>, transform_indices = @transform_3, window_bounds = array<i64: 1, 256>}, {pipeline_mode = #tpu.pipeline_mode<synchronous>, transform_indices = @transform_4, window_bounds = array<i64: 8, 128>}]} {
    %c0 = arith.constant 0 : index
    %c0_0 = arith.constant 0 : index
    %0 = vector.load %arg1[%c0, %c0_0] : memref<8x5xf32, #tpu.memory_space<vmem>>, vector<8x1xf32>
    %c0_1 = arith.constant 0 : index
    %c1 = arith.constant 1 : index
    %1 = vector.load %arg1[%c0_1, %c1] : memref<8x5xf32, #tpu.memory_space<vmem>>, vector<8x1xf32>
    %c0_2 = arith.constant 0 : index
    %c2 = arith.constant 2 : index
    %2 = vector.load %arg1[%c0_2, %c2] : memref<8x5xf32, #tpu.memory_space<vmem>>, vector<8x1xf32>
    %c0_3 = arith.constant 0 : index
    %c3 = arith.constant 3 : index
    %3 = vector.load %arg1[%c0_3, %c3] : memref<8x5xf32, #tpu.memory_space<vmem>>, vector<8x1xf32>
    %c0_4 = arith.constant 0 : index
    %c0_5 = arith.constant 0 : index
    %4 = vector.load %arg2[%c0_4, %c0_5] : memref<1x256xf32, #tpu.memory_space<vmem>>, vector<1x256xf32>
    %5 = vector.broadcast %0 : vector<8x1xf32> to vector<8x256xf32>
    %6 = vector.broadcast %4 : vector<1x256xf32> to vector<8x256xf32>
    %7 = arith.mulf %5, %6 : vector<8x256xf32>
    %8 = vector.broadcast %1 : vector<8x1xf32> to vector<8x256xf32>
    %9 = arith.addf %7, %8 : vector<8x256xf32>
    %10 = vector.broadcast %2 : vector<8x1xf32> to vector<8x256xf32>
    %11 = arith.mulf %9, %10 : vector<8x256xf32>
    %12 = math.tanh %11 : vector<8x256xf32>
    %cst = arith.constant 0.000000e+00 : f32
    %13 = vector.broadcast %cst : f32 to vector<1x1xf32>
    %c0_6 = arith.constant 0 : index
    %c4 = arith.constant 4 : index
    %14 = vector.load %arg1[%c0_6, %c4] : memref<8x5xf32, #tpu.memory_space<vmem>>, vector<8x1xf32>
    %15 = vector.broadcast %14 : vector<8x1xf32> to vector<8x256xf32>
    %16 = arith.mulf %12, %15 : vector<8x256xf32>
    %cst_7 = arith.constant dense<0.000000e+00> : vector<256xf32>
    %17 = vector.multi_reduction <add>, %16, %cst_7 [0] : vector<8x256xf32> to vector<256xf32>
    %18 = vector.shape_cast %17 : vector<256xf32> to vector<1x256xf32>
    %c0_8 = arith.constant 0 : index
    %c0_9 = arith.constant 0 : index
    %19 = vector.load %arg4[%c0_8, %c0_9] : memref<1x256xf32, #tpu.memory_space<vmem>>, vector<1x256xf32>
    tpu.vector_store %arg4[%c0_8, %c0_9], %18 {strides = array<i32>} : memref<1x256xf32, #tpu.memory_space<vmem>>, vector<1x256xf32>,
    %c0_10 = arith.constant 0 : index
    %c0_11 = arith.constant 0 : index
    %20 = vector.load %arg3[%c0_10, %c0_11] : memref<1x256xf32, #tpu.memory_space<vmem>>, vector<1x256xf32>
    %21 = arith.subf %18, %20 : vector<1x256xf32>
    %22 = arith.mulf %21, %21 : vector<1x256xf32>
    %cst_12 = arith.constant dense<0.000000e+00> : vector<1xf32>
    %23 = vector.multi_reduction <add>, %22, %cst_12 [1] : vector<1x256xf32> to vector<1xf32>
    %24 = vector.shape_cast %23 : vector<1xf32> to vector<1x1xf32>
    %25 = arith.addf %13, %24 : vector<1x1xf32>
    %cst_13 = arith.constant 3.906250e-03 : f32
    %26 = vector.broadcast %cst_13 : f32 to vector<1x1xf32>
    %27 = arith.mulf %25, %26 : vector<1x1xf32>
    %cst_14 = arith.constant 2.500000e-01 : f32
    %28 = vector.broadcast %cst_14 : f32 to vector<8x1xf32>
    %29 = arith.mulf %0, %28 : vector<8x1xf32>
    %30 = arith.addf %29, %1 : vector<8x1xf32>
    %31 = arith.subf %30, %3 : vector<8x1xf32>
    %32 = arith.mulf %31, %31 : vector<8x1xf32>
    %cst_15 = arith.constant dense<0.000000e+00> : vector<1xf32>
    %33 = vector.multi_reduction <add>, %32, %cst_15 [0] : vector<8x1xf32> to vector<1xf32>
    %34 = vector.shape_cast %33 : vector<1xf32> to vector<1x1xf32>
    %cst_16 = arith.constant 1.250000e-01 : f32
    %35 = vector.broadcast %cst_16 : f32 to vector<1x1xf32>
    %36 = arith.mulf %34, %35 : vector<1x1xf32>
    %37 = tpu.iota {dimensions = array<i32: 1>} : vector<8x128xi32>
    %c0_i32 = arith.constant 0 : i32
    %38 = vector.broadcast %c0_i32 : i32 to vector<8x128xi32>
    %39 = arith.cmpi eq, %37, %38 : vector<8x128xi32>
    %cst_17 = arith.constant 0.000000e+00 : f32
    %40 = vector.shape_cast %30 : vector<8x1xf32> to vector<8x1xf32>
    %41 = vector.broadcast %40 : vector<8x1xf32> to vector<8x128xf32>
    %42 = vector.broadcast %cst_17 : f32 to vector<8x128xf32>
    %43 = arith.select %39, %41, %42 : vector<8x128xi1>, vector<8x128xf32>
    %c1_i32 = arith.constant 1 : i32
    %44 = vector.broadcast %c1_i32 : i32 to vector<8x128xi32>
    %45 = arith.cmpi eq, %37, %44 : vector<8x128xi32>
    %46 = vector.shape_cast %27 : vector<1x1xf32> to vector<1x1xf32>
    %47 = vector.broadcast %46 : vector<1x1xf32> to vector<8x128xf32>
    %48 = arith.select %45, %47, %43 : vector<8x128xi1>, vector<8x128xf32>
    %c2_i32 = arith.constant 2 : i32
    %49 = vector.broadcast %c2_i32 : i32 to vector<8x128xi32>
    %50 = arith.cmpi eq, %37, %49 : vector<8x128xi32>
    %51 = vector.shape_cast %36 : vector<1x1xf32> to vector<1x1xf32>
    %52 = vector.broadcast %51 : vector<1x1xf32> to vector<8x128xf32>
    %53 = arith.select %50, %52, %48 : vector<8x128xi1>, vector<8x128xf32>
    %c0_18 = arith.constant 0 : index
    %c0_19 = arith.constant 0 : index
    %54 = vector.load %arg5[%c0_18, %c0_19] : memref<8x128xf32, #tpu.memory_space<vmem>>, vector<8x128xf32>
    tpu.vector_store %arg5[%c0_18, %c0_19], %53 {strides = array<i32>} : memref<8x128xf32, #tpu.memory_space<vmem>>, vector<8x128xf32>,
    return
  }
  func.func @transform_0(%arg0: i32) -> (i32, i32) {
    %c0_i32 = arith.constant 0 : i32
    %c0_i32_0 = arith.constant 0 : i32
    %c0_i32_1 = arith.constant 0 : i32
    return %c0_i32, %c0_i32_0 : i32, i32
  }
  func.func @transform_1(%arg0: i32) -> (i32, i32) {
    %c0_i32 = arith.constant 0 : i32
    %c0_i32_0 = arith.constant 0 : i32
    %c0_i32_1 = arith.constant 0 : i32
    return %c0_i32, %c0_i32_0 : i32, i32
  }
  func.func @transform_2(%arg0: i32) -> (i32, i32) {
    %c0_i32 = arith.constant 0 : i32
    %c0_i32_0 = arith.constant 0 : i32
    %c0_i32_1 = arith.constant 0 : i32
    return %c0_i32, %c0_i32_0 : i32, i32
  }
  func.func @transform_3(%arg0: i32) -> (i32, i32) {
    %c0_i32 = arith.constant 0 : i32
    %c0_i32_0 = arith.constant 0 : i32
    %c0_i32_1 = arith.constant 0 : i32
    return %c0_i32, %c0_i32_0 : i32, i32
  }
  func.func @transform_4(%arg0: i32) -> (i32, i32) {
    %c0_i32 = arith.constant 0 : i32
    %c0_i32_0 = arith.constant 0 : i32
    %c0_i32_1 = arith.constant 0 : i32
    return %c0_i32, %c0_i32_0 : i32, i32
  }
}

</mosaic_0001>

<llo_original>
// kernel: call.1
$region0: #{call.1}
  #allocation0 [shape = 'u32[]', space=smem, size = 0x4, offset = 0x4, fixed_abs, tag = 'smem constant byte address 0x4 - core index']
  #allocation1 [shape = 'u32[144,128]{1,0:T(1,128)}', space=vmem, size = 0x12000, scoped, tag = 'internal scratch']
  %s0 = inlined_call_operand.hbm [shape: f32[8,5], index: 0, kind: input, shape index: {}]
  %s1 = inlined_call_operand.vmem [shape: f32[1,256], index: 1, kind: input, shape index: {}]
  %s2 = inlined_call_operand.vmem [shape: f32[1,256], index: 2, kind: input, shape index: {}]
  %s3 = inlined_call_operand.hbm [shape: f32[1,256], index: 3, kind: output, shape index: {0}]
  %s4 = inlined_call_operand.hbm [shape: f32[8,128], index: 4, kind: output, shape index: {1}]
  %5 = xla_tuple %s3, %s4
  %s6 = sld [smem:[#allocation0]]
  $region34: #{call.1} parent=0
    _
  %s8 = ssub.s32 1, %s6
  %s9 = scalar_select 0, %s8, %s6
  $region1: #{call.1} parent=0
    #allocation2 [shape = 'u8[4096]{0}', space=vmem, size = 0x1000, scoped, tag = 'input window, operand 0, single buffered']
    #allocation3 [shape = 's32[1]{0}', space=sflag, size = 0x4, scoped, tag = 'scoped memory for call.1']
    #allocation4 [shape = 's32[1]{0}', space=sflag, size = 0x4, scoped, tag = 'scoped memory for call.1']
    #allocation5 [shape = 'u8[1024]{0}', space=vmem, size = 0x400, scoped, tag = 'output window, operand 0, single buffered']
    #allocation6 [shape = 'u8[4096]{0}', space=vmem, size = 0x1000, scoped, tag = 'output window, operand 1, single buffered']
    #allocation7 [shape = 's32[1]{0}', space=sflag, size = 0x4, scoped, tag = 'scoped memory for call.1']
    %10 = vsyncpa [#allocation3], 0
    %11 = vsyncpa [#allocation4], 0
    %12 = vsyncpa [#allocation7], 0
    // Predicated region
    $region2: #{call.1} parent=1 // pred_check
      _
    $region3: #{call.1} parent=1 // pred_check_branch
      %14 = sbr.rel (0) target = $region5
    $region4: #{call.1} parent=1 // pred_region
      %s16 = ssub.s32 128, 128
      %17 = vsyncadd [#allocation3], %s16
      %s19 = sshll.u32 [#allocation2], 4
      %s20 = int_to_ptr.vmem [resolvable:$true] %s19
      %22 = dma.hbm_to_vmem [thread:$0]  %s0, 128, %s20, [#allocation3]
    $region5: #{call.1} parent=1 // pred_fallthru
      _
    // Predicated region
    $region6: #{call.1} parent=1 // pred_check
      _
    $region7: #{call.1} parent=1 // pred_check_branch
      %24 = sbr.rel (0) target = $region9
    $region8: #{call.1} parent=1 // pred_region
      _
    $region9: #{call.1} parent=1 // pred_fallthru
      _
    // Predicated region
    $region10: #{call.1} parent=1 // pred_check
      _
    $region11: #{call.1} parent=1 // pred_check_branch
      %26 = sbr.rel (0) target = $region13
    $region12: #{call.1} parent=1 // pred_region
      _
    $region13: #{call.1} parent=1 // pred_fallthru
      _
    // Predicated region
    $region14: #{call.1} parent=1 // pred_check
      _
    $region15: #{call.1} parent=1 // pred_check_branch
      %28 = sbr.rel (0) target = $region17
    $region16: #{call.1} parent=1 // pred_region
      %29 = dma.done [#allocation3], 128
    $region17: #{call.1} parent=1 // pred_fallthru
      _
    %v30 = vld [vmem:[#allocation2] sm:$0xff]
    %v31 = vld [vmem:[%s1] sm:$0x3]
    %33 = vset.pattern.permute.xlu0 0
    %34 = vperm.xlu0 %33, %v30
    %v35 = vpop.permute.xlu0 %34
    %v38 = vlaneseq
    %v39 = vshrl.u32 %v38, 7
    %v40 = vsub.s32 0, %v39
    %v41 = vrot.slane %v31, %v40
    %v42 = vlaneseq
    %v43 = vshrl.u32 %v42, 7
    %v44 = vsub.s32 1, %v43
    %v45 = vrot.slane %v31, %v44
    %v48 = vmul.f32 %v35, %v41
    %v49 = vmul.f32 %v35, %v45
    %50 = vset.pattern.permute.xlu0 1
    %51 = vperm.xlu0 %50, %v30
    %v52 = vpop.permute.xlu0 %51
    %v54 = vadd.f32 %v48, %v52
    %v55 = vadd.f32 %v49, %v52
    %56 = vset.pattern.permute.xlu0 2
    %57 = vperm.xlu0 %56, %v30
    %v58 = vpop.permute.xlu0 %57
    %v60 = vmul.f32 %v54, %v58
    %v61 = vmul.f32 %v55, %v58
    %v62 = vtanh.pop %v60
    %v63 = vtanh.pop %v61
    %64 = vset.pattern.permute.xlu0 4
    %65 = vperm.xlu0 %64, %v30
    %v66 = vpop.permute.xlu0 %65
    %v68 = vmul.f32 %v62, %v66
    %v69 = vmul.f32 %v63, %v66
    %v70 = vrot.slane %v68, 4
    %v71 = vadd.f32 %v68, %v70
    %v72 = vrot.slane %v71, 2
    %v73 = vadd.f32 %v71, %v72
    %v74 = vrot.slane %v73, 1
    %v75 = vadd.f32 %v73, %v74
    %v76 = vrot.slane %v69, 4
    %v77 = vadd.f32 %v69, %v76
    %v78 = vrot.slane %v77, 2
    %v79 = vadd.f32 %v77, %v78
    %v80 = vrot.slane %v79, 1
    %v81 = vadd.f32 %v79, %v80
    %v84 = vcombine.low %v75, %v81
    %v86 = vunpack.c.l.s4 1966171168
    %v87 = vunpack.c.0.s8 %v86
    %v88 = vlaneseq
    %v89 = vshrl.u32 %v88, 7
    %v90 = vsub.s32 %v87, %v89
    %v91 = vrot.slane %v84, %v90
    %v93 = vunpack.c.l.s4 1966171168
    %v94 = vunpack.c.0.s8 %v93
    %v95 = vlaneseq
    %v96 = vshrl.u32 %v95, 7
    %v97 = vsub.s32 %v94, %v96
    %v98 = vrot.slane %v91, %v97
    %v100 = vlaneseq
    %vm101 = vcmp.ge.s32.totalorder %v100, 0
    %vm102 = vcmp.lt.s32.totalorder %v100, 256
    %vm103 = vmand %vm101, %vm102
    %104 = vst.msk [vmem:[#allocation5] sm:$0x3] %vm103, %v98
    %v105 = vld [vmem:[%s2] sm:$0x3]
    %v107 = vlaneseq
    %v108 = vshrl.u32 %v107, 7
    %v109 = vsub.s32 0, %v108
    %v110 = vrot.slane %v105, %v109
    %v111 = vlaneseq
    %v112 = vshrl.u32 %v111, 7
    %v113 = vsub.s32 1, %v112
    %v114 = vrot.slane %v105, %v113
    %v117 = vsub.f32 %v75, %v110
    %v118 = vsub.f32 %v81, %v114
    %v119 = vmul.f32 %v117, %v117
    %v120 = vmul.f32 %v118, %v118
    %vm121 = vcmask 1040384
    %v122 = vsel %vm121, %v119, 0.0
    %v123 = vsel %vm121, %v120, 0.0
    %v124 = vadd.f32 %v122, %v123
    %125 = vadd.xlane.f32.xlu0 %v124
    %v126 = vpop.xlane.xlu0 %125
    %v127 = vadd.f32 %v126, 0.0
    %v128 = vmul.f32 %v127, 0.00390625
    %v129 = vmul.f32 %v30, 0.25
    %130 = vrot.lane.b32.xlu0 %v30, 127
    %v131 = vpop.permute.xlu0 %130
    %v133 = vadd.f32 %v129, %v131
    %134 = vrot.lane.b32.xlu0 %v30, 125
    %v135 = vpop.permute.xlu0 %134
    %v137 = vsub.f32 %v133, %v135
    %v138 = vmul.f32 %v137, %v137
    %vm139 = vcmask 7168
    %v140 = vsel %vm139, %v138, 0.0
    %v141 = vrot.slane %v140, 4
    %v142 = vadd.f32 %v140, %v141
    %v143 = vrot.slane %v142, 2
    %v144 = vadd.f32 %v142, %v143
    %v145 = vrot.slane %v144, 1
    %v146 = vadd.f32 %v144, %v145
    %v147 = vmul.f32 %v146, 0.125
    %v148 = vlaneseq
    %v149 = vand.u32 %v148, 127
    %vm150 = vcmp.eq.s32.totalorder %v149, 0
    %152 = vset.pattern.permute.xlu0 0
    %153 = vperm.xlu0 %152, %v133
    %v154 = vpop.permute.xlu0 %153
    %v156 = vsel %vm150, %v154, 0.0
    %vm157 = vcmp.eq.s32.totalorder %v149, 1
    %v158 = vlaneseq
    %v159 = vshrl.u32 %v158, 7
    %v160 = vsub.s32 0, %v159
    %v161 = vrot.slane %v128, %v160
    %v162 = vsel %vm157, %v161, %v156
    %vm163 = vcmp.eq.s32.totalorder %v149, 2
    %165 = vset.pattern.permute.xlu0 0
    %166 = vperm.xlu0 %165, %v147
    %v167 = vpop.permute.xlu0 %166
    %v169 = vsel %vm163, %v167, %v162
    %170 = vst [vmem:[#allocation6] sm:$0xff] %v169
    // Predicated region
    $region18: #{call.1} parent=1 // pred_check
      _
    $region19: #{call.1} parent=1 // pred_check_branch
      %172 = sbr.rel (0) target = $region21
    $region20: #{call.1} parent=1 // pred_region
      %s174 = ssub.s32 32, 32
      %175 = vsyncadd [#allocation4], %s174
      %s177 = sshll.u32 [#allocation5], 4
      %s178 = int_to_ptr.vmem [resolvable:$true] %s177
      %180 = dma.vmem_to_hbm [thread:$0]  %s178, 32, %s3, [#allocation4]
    $region21: #{call.1} parent=1 // pred_fallthru
      _
    // Predicated region
    $region22: #{call.1} parent=1 // pred_check
      _
    $region23: #{call.1} parent=1 // pred_check_branch
      %182 = sbr.rel (0) target = $region25
    $region24: #{call.1} parent=1 // pred_region
      %s184 = ssub.s32 128, 128
      %185 = vsyncadd [#allocation7], %s184
      %s187 = sshll.u32 [#allocation6], 4
      %s188 = int_to_ptr.vmem [resolvable:$true] %s187
      %190 = dma.vmem_to_hbm [thread:$0]  %s188, 128, %s4, [#allocation7]
    $region25: #{call.1} parent=1 // pred_fallthru
      _
    // Predicated region
    $region26: #{call.1} parent=1 // pred_check
      _
    $region27: #{call.1} parent=1 // pred_check_branch
      %192 = sbr.rel (0) target = $region29
    $region28: #{call.1} parent=1 // pred_region
      %193 = dma.done [#allocation4], 32
    $region29: #{call.1} parent=1 // pred_fallthru
      _
    // Predicated region
    $region30: #{call.1} parent=1 // pred_check
      _
    $region31: #{call.1} parent=1 // pred_check_branch
      %195 = sbr.rel (0) target = $region33
    $region32: #{call.1} parent=1 // pred_region
      %196 = dma.done [#allocation7], 128
    $region33: #{call.1} parent=1 // pred_fallthru
      _
    %197 = vsyncpa [#allocation3], 1
    %198 = vsyncpa [#allocation4], 1
    %199 = vsyncpa [#allocation7], 1

</llo_original>
